<compile_context>
chip_gen: v7x
topology: tpu7x:2x2x1
jax: 0.10.0
libtpu: 0.0.40
codegen_flags: <defaults>
</compile_context>

<pallas_src>
import functools

import jax
import jax.numpy as jnp
from jax.experimental import pallas as pl
from jax.experimental.pallas import tpu as pltpu


def _round_up(x, m):
    return ((x + m - 1) // m) * m


def _mmd_kernel(scales_ref, tgt_rows_ref, row_sq_ref, tgt_ref, src_ref,
                tgt_sq_ref, src_sq_ref, part_ref, *, kernel_num, use_bf16_exp):
    """One grid step: a `tm`-row tile of target rows vs all columns.

    scales_ref   : (kernel_num,) f32 SMEM  -1/(bandwidth * mul^s)
    tgt_rows_ref : (tm, D)              target rows for this tile (f32 or bf16)
    row_sq_ref   : (tm, 1)   f32        squared norms of those rows (inf = pad)
    tgt_ref      : (b_pad, D)           resident target (columns of YY)
    src_ref      : (b_pad, D)           resident source (columns of YX)
    tgt_sq_ref   : (1, b_pad) f32       target column squared norms (inf = pad)
    src_sq_ref   : (1, b_pad) f32       source column squared norms (inf = pad)
    part_ref     : (8, 128)  f32        this tile's partial sum (broadcast)
    """
    tgt_rows = tgt_rows_ref[...]
    row_sq = row_sq_ref[...]                     # (tm, 1) f32

    # Gram matmuls on the MXU (no explicit transpose materialized).
    dims = (((1,), (1,)), ((), ()))
    yy_dot = jax.lax.dot_general(tgt_rows, tgt_ref[...], dims,
                                 preferred_element_type=jnp.float32)
    yx_dot = jax.lax.dot_general(tgt_rows, src_ref[...], dims,
                                 preferred_element_type=jnp.float32)

    # ||y_i - x_j||^2 via the Gram identity; poisoned (inf) norms of padded
    # rows/columns make every exp below underflow to 0 -> no masking needed.
    yy_l2 = jnp.maximum(row_sq + tgt_sq_ref[...] - 2.0 * yy_dot, 0.0)
    yx_l2 = jnp.maximum(row_sq + src_sq_ref[...] - 2.0 * yx_dot, 0.0)

    # Only YY and YX are exponentiated (XY cancels, XX is unused in the loss).
    # Accumulate across scales, one cross-lane reduction per step.
    kern = jnp.zeros(yy_l2.shape, jnp.float32)
    for s in range(kernel_num):
        scale = scales_ref[s]                    # scalar, negative
        yy_arg = yy_l2 * scale
        yx_arg = yx_l2 * scale
        if use_bf16_exp:
            e_yy = jnp.exp(yy_arg.astype(jnp.bfloat16)).astype(jnp.float32)
            e_yx = jnp.exp(yx_arg.astype(jnp.bfloat16)).astype(jnp.float32)
        else:
            e_yy = jnp.exp(yy_arg)
            e_yx = jnp.exp(yx_arg)
        kern = kern + (e_yy - e_yx)

    tile_sum = jnp.sum(kern)
    part_ref[...] = jnp.broadcast_to(tile_sum, part_ref.shape).astype(jnp.float32)


def mmd_loss(source, target, kernel_mul=2.0, kernel_num=5, fix_sigma=None,
             use_bf16_matmul=False, use_bf16_exp=False, max_tile_rows=256):
    """JAX wrapper matching MMD_Loss(kernel_mul, kernel_num).forward(source, target)."""
    assert source.ndim == 2 and source.shape == target.shape
    b, d = source.shape
    n = 2 * b
    kernel_mul = float(kernel_mul)
    kernel_num = int(kernel_num)

    src = source.astype(jnp.float32)
    tgt = target.astype(jnp.float32)

    # Center by the joint column mean (distances are translation invariant);
    # makes the Gram-identity distances and the closed-form bandwidth robust
    # against catastrophic cancellation for data with a large common offset.
    center = (jnp.sum(src, axis=0) + jnp.sum(tgt, axis=0)) / float(n)
    src = src - center
    tgt = tgt - center

    src_sq = jnp.sum(src * src, axis=1)          # (b,) f32 (clean, unpoisoned)
    tgt_sq = jnp.sum(tgt * tgt, axis=1)          # (b,) f32

    # ---- bandwidth + per-scale constants (tiny XLA reduction, wrapper-side,
    #      keeps the Pallas grid carry-free so it can run "parallel") ----
    if fix_sigma is not None:
        bandwidth = jnp.float32(fix_sigma)
    else:
        sum_sq = jnp.sum(src_sq) + jnp.sum(tgt_sq)
        col_sum = jnp.sum(src, axis=0) + jnp.sum(tgt, axis=0)  # ~0 after centering
        total_l2 = 2.0 * float(n) * sum_sq - 2.0 * jnp.sum(col_sum * col_sum)
        bandwidth = total_l2 / float(n * n - n)
    bandwidth = bandwidth / (kernel_mul ** (kernel_num // 2))
    scales = jnp.stack([-1.0 / (bandwidth * (kernel_mul ** s))
                        for s in range(kernel_num)]).astype(jnp.float32)

    # ---- tiling: pad rows/cols to a multiple of 8 only; size tm from b_pad
    #      and a VMEM budget for the (tm, b_pad) temporaries ----
    b_pad = _round_up(b, 8)
    LIVE_TEMPS = 8                       # dots, l2s, exps, kern accumulator
    TEMP_BUDGET = 8 << 20                # ~8 MiB of (tm, b_pad) f32 temporaries
    tm_by_vmem = max(8, ((TEMP_BUDGET // (LIVE_TEMPS * 4 * b_pad)) // 8) * 8)
    tm_target = min(int(max_tile_rows), b_pad, max(128, tm_by_vmem))
    tm_target = max(8, (tm_target // 8) * 8)
    n_tiles = -(-b_pad // tm_target)                 # cdiv
    tm = _round_up(-(-b_pad // n_tiles), 8)          # even tiles, minimal padding
    row_pad = n_tiles * tm                           # >= b_pad

    # ---- padded inputs (bf16 cast hoisted here when enabled) ----
    data_dtype = jnp.bfloat16 if use_bf16_matmul else jnp.float32
    tgt_data = jnp.pad(tgt, ((0, row_pad - b), (0, 0))).astype(data_dtype)
    src_data = jnp.pad(src, ((0, b_pad - b), (0, 0))).astype(data_dtype)

    POISON = float("inf")   # exp(-inf) == 0 -> padded rows/cols contribute 0
    tgt_row_sq = jnp.pad(tgt_sq, (0, row_pad - b), constant_values=POISON)[:, None]
    tgt_col_sq = jnp.pad(tgt_sq, (0, b_pad - b), constant_values=POISON)[None, :]
    src_col_sq = jnp.pad(src_sq, (0, b_pad - b), constant_values=POISON)[None, :]

    # ---- VMEM budget (per generation) ----
    data_bytes = 2 if use_bf16_matmul else 4
    resident_bytes = 2 * b_pad * d * data_bytes + 2 * 8 * b_pad * 4
    per_step_bytes = (2 * tm * d * data_bytes + 2 * tm * 128 * 4
                      + LIVE_TEMPS * tm * b_pad * 4 + 2 * 8 * 128 * 4)
    needed = 2 * resident_bytes + per_step_bytes
    try:
        info = pltpu.get_tpu_info()
        vmem_cap = int(getattr(info, "vmem_capacity_bytes", 64 * 1024 * 1024))
    except Exception:
        vmem_cap = 64 * 1024 * 1024
    vmem_limit = int(min(vmem_cap - (2 << 20), max(needed + (4 << 20), 16 << 20)))

    kernel = functools.partial(_mmd_kernel, kernel_num=kernel_num,
                               use_bf16_exp=bool(use_bf16_exp))
    out_shape = jax.ShapeDtypeStruct((8, 128 * n_tiles), jnp.float32)

    def run(single_buffer_residents):
        def res_spec(shape):
            # Constant-index residents: single-buffer to halve resident VMEM.
            if single_buffer_residents:
                return pl.BlockSpec(shape, lambda i: (0, 0),
                                    pipeline_mode=pl.Buffered(1))
            return pl.BlockSpec(shape, lambda i: (0, 0))

        in_specs = [
            pl.BlockSpec(memory_space=pltpu.MemorySpace.SMEM),  # scales
            pl.BlockSpec((tm, d), lambda i: (i, 0)),            # target row tile
            pl.BlockSpec((tm, 1), lambda i: (i, 0)),            # row sq norms tile
            res_spec((b_pad, d)),                               # target (resident)
            res_spec((b_pad, d)),                               # source (resident)
            res_spec((1, b_pad)),                               # target col sq norms
            res_spec((1, b_pad)),                               # source col sq norms
        ]
        return pl.pallas_call(
            kernel,
            out_shape=out_shape,
            grid=(n_tiles,),
            in_specs=in_specs,
            out_specs=pl.BlockSpec((8, 128), lambda i: (0, i)),
            compiler_params=pltpu.CompilerParams(
                dimension_semantics=("parallel",),   # no carry -> megacore-splittable
                vmem_limit_bytes=vmem_limit,
            ),
        )(scales, tgt_data, tgt_row_sq, tgt_data, src_data, tgt_col_sq, src_col_sq)

    try:
        parts = run(True)
    except Exception:
        # Fallback for JAX versions that reject pipeline_mode=pl.Buffered(1).
        parts = run(False)

    # Final reduction over per-tile partial sums + mean over the (b, b) block.
    loss = jnp.sum(parts[0, ::128]) * (1.0 / float(b * b))
    return loss.astype(jnp.float32)


def mmd_loss_reference(source, target, kernel_mul=2.0, kernel_num=5):
    """Plain-JAX replica of the original PyTorch module (for verification)."""
    b = source.shape[0]
    total = jnp.concatenate([source, target], axis=0).astype(jnp.float32)
    n = total.shape[0]
    diff = total[None, :, :] - total[:, None, :]
    l2 = jnp.sum(diff * diff, axis=2)
    bandwidth = jnp.sum(l2) / (n * n - n)
    bandwidth = bandwidth / (kernel_mul ** (kernel_num // 2))
    kern = sum(jnp.exp(-l2 / (bandwidth * kernel_mul ** i)) for i in range(kernel_num))
    XY = kern[:b, b:]
    YY = kern[b:, b:]
    YX = kern[b:, :b]
    return jnp.mean(XY + YY - XY - YX)


def _supports_bf16_transcendentals():
    """bf16 EUP exists on v6e/v7x; v2-v5 lack it -> keep exponentials in f32."""
    try:
        kind = jax.devices()[0].device_kind.lower()
    except Exception:
        return False
    if any(old in kind for old in ("v2", "v3", "v4", "v5")):
        return False
    return ("v6" in kind) or ("v7" in kind) or ("trillium" in kind)


if __name__ == "__main__":
    key = jax.random.PRNGKey(0)
    k1, k2, k3, k4, k5, k6 = jax.random.split(key, 6)

    # Test 1: aligned batch, single row tile, f32 everywhere.
    B, D = 8, 32
    src = jax.random.normal(k1, (B, D), dtype=jnp.float32)
    tgt = jax.random.normal(k2, (B, D), dtype=jnp.float32) + 0.5
    loss = mmd_loss(src, tgt, kernel_mul=2.0, kernel_num=5)
    jax.block_until_ready(loss)
    assert loss.shape == () and loss.dtype == jnp.float32
    ref = mmd_loss_reference(src, tgt)
    assert jnp.allclose(loss, ref, rtol=1e-2, atol=1e-3), (float(loss), float(ref))

    # Test 2: unaligned batch + large common offset + forced multi-tile grid
    # (exercises inf-poisoned padding, parallel per-tile outputs, centering).
    B2, D2 = 10, 40
    src2 = jax.random.normal(k3, (B2, D2), dtype=jnp.float32) + 100.0
    tgt2 = jax.random.normal(k4, (B2, D2), dtype=jnp.float32) + 100.25
    loss2 = mmd_loss(src2, tgt2, kernel_mul=2.0, kernel_num=5, max_tile_rows=8)
    jax.block_until_ready(loss2)
    ref2 = mmd_loss_reference(src2, tgt2)
    assert jnp.allclose(loss2, ref2, rtol=1e-2, atol=1e-3), (float(loss2), float(ref2))

    # Test 3: bf16 MXU path (all generations) + bf16 EUP exponentials where
    # supported (v6e/v7x). Validated against a looser tolerance.
    B3, D3 = 12, 64
    src3 = jax.random.normal(k5, (B3, D3), dtype=jnp.float32)
    tgt3 = jax.random.normal(k6, (B3, D3), dtype=jnp.float32) + 1.0
    loss3 = mmd_loss(src3, tgt3, use_bf16_matmul=True,
                     use_bf16_exp=_supports_bf16_transcendentals())
    jax.block_until_ready(loss3)
    ref3 = mmd_loss_reference(src3, tgt3)
    assert jnp.allclose(loss3, ref3, rtol=1e-1, atol=5e-3), (float(loss3), float(ref3))

    print("KERNEL_OK")
</pallas_src>

<mosaic_0001>
module attributes {stable_mosaic.version = 11 : i64} {
  func.func @_mmd_kernel(%arg0: i32, %arg1: memref<5xf32, #tpu.memory_space<smem>>, %arg2: memref<8x32xf32, #tpu.memory_space<vmem>>, %arg3: memref<8x1xf32, #tpu.memory_space<vmem>>, %arg4: memref<8x32xf32, #tpu.memory_space<vmem>>, %arg5: memref<8x32xf32, #tpu.memory_space<vmem>>, %arg6: memref<1x8xf32, #tpu.memory_space<vmem>>, %arg7: memref<1x8xf32, #tpu.memory_space<vmem>>, %arg8: memref<8x128xf32, #tpu.memory_space<vmem>>) attributes {dimension_semantics = [#tpu.dimension_semantics<parallel>], iteration_bounds = array<i64: 1>, scalar_prefetch = 0 : i64, scratch_operands = 0 : i64, tpu.core_type = #tpu.core_type<tc>, window_params = [{transform_indices = @transform_0, window_bounds = array<i64: 5>}, {transform_indices = @transform_1, window_bounds = array<i64: 8, 32>}, {transform_indices = @transform_2, window_bounds = array<i64: 8, 1>}, {pipeline_mode = #tpu.pipeline_mode<synchronous>, transform_indices = @transform_3, window_bounds = array<i64: 8, 32>}, {pipeline_mode = #tpu.pipeline_mode<synchronous>, transform_indices = @transform_4, window_bounds = array<i64: 8, 32>}, {pipeline_mode = #tpu.pipeline_mode<synchronous>, transform_indices = @transform_5, window_bounds = array<i64: 1, 8>}, {pipeline_mode = #tpu.pipeline_mode<synchronous>, transform_indices = @transform_6, window_bounds = array<i64: 1, 8>}, {transform_indices = @transform_7, window_bounds = array<i64: 8, 128>}]} {
    %c0 = arith.constant 0 : index
    %c0_0 = arith.constant 0 : index
    %0 = vector.load %arg2[%c0, %c0_0] : memref<8x32xf32, #tpu.memory_space<vmem>>, vector<8x32xf32>
    %c0_1 = arith.constant 0 : index
    %c0_2 = arith.constant 0 : index
    %1 = vector.load %arg3[%c0_1, %c0_2] : memref<8x1xf32, #tpu.memory_space<vmem>>, vector<8x1xf32>
    %c0_3 = arith.constant 0 : index
    %c0_4 = arith.constant 0 : index
    %2 = vector.load %arg4[%c0_3, %c0_4] : memref<8x32xf32, #tpu.memory_space<vmem>>, vector<8x32xf32>
    %cst = arith.constant dense<0.000000e+00> : vector<8x8xf32>
    %3 = tpu.matmul %0, %2, %cst {dimension_numbers = #tpu.dot_dimension_numbers<[1], [1], [0], [0], [0, 0, 1, 0], [], []>} : vector<8x32xf32>, vector<8x32xf32>, vector<8x8xf32> -> vector<8x8xf32>
    %c0_5 = arith.constant 0 : index
    %c0_6 = arith.constant 0 : index
    %4 = vector.load %arg5[%c0_5, %c0_6] : memref<8x32xf32, #tpu.memory_space<vmem>>, vector<8x32xf32>
    %cst_7 = arith.constant dense<0.000000e+00> : vector<8x8xf32>
    %5 = tpu.matmul %0, %4, %cst_7 {dimension_numbers = #tpu.dot_dimension_numbers<[1], [1], [0], [0], [0, 0, 1, 0], [], []>} : vector<8x32xf32>, vector<8x32xf32>, vector<8x8xf32> -> vector<8x8xf32>
    %c0_8 = arith.constant 0 : index
    %c0_9 = arith.constant 0 : index
    %6 = vector.load %arg6[%c0_8, %c0_9] : memref<1x8xf32, #tpu.memory_space<vmem>>, vector<1x8xf32>
    %7 = vector.broadcast %1 : vector<8x1xf32> to vector<8x8xf32>
    %8 = vector.broadcast %6 : vector<1x8xf32> to vector<8x8xf32>
    %9 = arith.addf %7, %8 : vector<8x8xf32>
    %cst_10 = arith.constant 2.000000e+00 : f32
    %10 = vector.broadcast %cst_10 : f32 to vector<8x8xf32>
    %11 = arith.mulf %10, %3 : vector<8x8xf32>
    %12 = arith.subf %9, %11 : vector<8x8xf32>
    %cst_11 = arith.constant 0.000000e+00 : f32
    %13 = vector.broadcast %cst_11 : f32 to vector<8x8xf32>
    %14 = arith.maximumf %12, %13 : vector<8x8xf32>
    %c0_12 = arith.constant 0 : index
    %c0_13 = arith.constant 0 : index
    %15 = vector.load %arg7[%c0_12, %c0_13] : memref<1x8xf32, #tpu.memory_space<vmem>>, vector<1x8xf32>
    %16 = vector.broadcast %1 : vector<8x1xf32> to vector<8x8xf32>
    %17 = vector.broadcast %15 : vector<1x8xf32> to vector<8x8xf32>
    %18 = arith.addf %16, %17 : vector<8x8xf32>
    %cst_14 = arith.constant 2.000000e+00 : f32
    %19 = vector.broadcast %cst_14 : f32 to vector<8x8xf32>
    %20 = arith.mulf %19, %5 : vector<8x8xf32>
    %21 = arith.subf %18, %20 : vector<8x8xf32>
    %cst_15 = arith.constant 0.000000e+00 : f32
    %22 = vector.broadcast %cst_15 : f32 to vector<8x8xf32>
    %23 = arith.maximumf %21, %22 : vector<8x8xf32>
    %cst_16 = arith.constant 0.000000e+00 : f32
    %24 = vector.broadcast %cst_16 : f32 to vector<8x8xf32>
    %c0_17 = arith.constant 0 : index
    %25 = memref.load %arg1[%c0_17] : memref<5xf32, #tpu.memory_space<smem>>
    %26 = vector.broadcast %25 : f32 to vector<8x8xf32>
    %27 = arith.mulf %14, %26 : vector<8x8xf32>
    %28 = vector.broadcast %25 : f32 to vector<8x8xf32>
    %29 = arith.mulf %23, %28 : vector<8x8xf32>
    %30 = math.exp %27 : vector<8x8xf32>
    %31 = math.exp %29 : vector<8x8xf32>
    %32 = arith.subf %30, %31 : vector<8x8xf32>
    %33 = arith.addf %24, %32 : vector<8x8xf32>
    %c1 = arith.constant 1 : index
    %34 = memref.load %arg1[%c1] : memref<5xf32, #tpu.memory_space<smem>>
    %35 = vector.broadcast %34 : f32 to vector<8x8xf32>
    %36 = arith.mulf %14, %35 : vector<8x8xf32>
    %37 = vector.broadcast %34 : f32 to vector<8x8xf32>
    %38 = arith.mulf %23, %37 : vector<8x8xf32>
    %39 = math.exp %36 : vector<8x8xf32>
    %40 = math.exp %38 : vector<8x8xf32>
    %41 = arith.subf %39, %40 : vector<8x8xf32>
    %42 = arith.addf %33, %41 : vector<8x8xf32>
    %c2 = arith.constant 2 : index
    %43 = memref.load %arg1[%c2] : memref<5xf32, #tpu.memory_space<smem>>
    %44 = vector.broadcast %43 : f32 to vector<8x8xf32>
    %45 = arith.mulf %14, %44 : vector<8x8xf32>
    %46 = vector.broadcast %43 : f32 to vector<8x8xf32>
    %47 = arith.mulf %23, %46 : vector<8x8xf32>
    %48 = math.exp %45 : vector<8x8xf32>
    %49 = math.exp %47 : vector<8x8xf32>
    %50 = arith.subf %48, %49 : vector<8x8xf32>
    %51 = arith.addf %42, %50 : vector<8x8xf32>
    %c3 = arith.constant 3 : index
    %52 = memref.load %arg1[%c3] : memref<5xf32, #tpu.memory_space<smem>>
    %53 = vector.broadcast %52 : f32 to vector<8x8xf32>
    %54 = arith.mulf %14, %53 : vector<8x8xf32>
    %55 = vector.broadcast %52 : f32 to vector<8x8xf32>
    %56 = arith.mulf %23, %55 : vector<8x8xf32>
    %57 = math.exp %54 : vector<8x8xf32>
    %58 = math.exp %56 : vector<8x8xf32>
    %59 = arith.subf %57, %58 : vector<8x8xf32>
    %60 = arith.addf %51, %59 : vector<8x8xf32>
    %c4 = arith.constant 4 : index
    %61 = memref.load %arg1[%c4] : memref<5xf32, #tpu.memory_space<smem>>
    %62 = vector.broadcast %61 : f32 to vector<8x8xf32>
    %63 = arith.mulf %14, %62 : vector<8x8xf32>
    %64 = vector.broadcast %61 : f32 to vector<8x8xf32>
    %65 = arith.mulf %23, %64 : vector<8x8xf32>
    %66 = math.exp %63 : vector<8x8xf32>
    %67 = math.exp %65 : vector<8x8xf32>
    %68 = arith.subf %66, %67 : vector<8x8xf32>
    %69 = arith.addf %60, %68 : vector<8x8xf32>
    %70 = vector.shape_cast %69 : vector<8x8xf32> to vector<1x8x8xf32>
    %cst_18 = arith.constant dense<0.000000e+00> : vector<1xf32>
    %71 = vector.multi_reduction <add>, %70, %cst_18 [1, 2] : vector<1x8x8xf32> to vector<1xf32>
    %72 = vector.shape_cast %71 : vector<1xf32> to vector<1x1x1xf32>
    %73 = vector.extract %72[0, 0, 0] : f32 from vector<1x1x1xf32>
    %74 = vector.broadcast %73 : f32 to vector<8x128xf32>
    %c0_19 = arith.constant 0 : index
    %c0_20 = arith.constant 0 : index
    %75 = vector.load %arg8[%c0_19, %c0_20] : memref<8x128xf32, #tpu.memory_space<vmem>>, vector<8x128xf32>
    tpu.vector_store %arg8[%c0_19, %c0_20], %74 {strides = array<i32>} : memref<8x128xf32, #tpu.memory_space<vmem>>, vector<8x128xf32>,
    return
  }
  func.func @transform_0(%arg0: i32) -> i32 {
    %c0_i32 = arith.constant 0 : i32
    %c0_i32_0 = arith.constant 0 : i32
    return %c0_i32 : i32
  }
  func.func @transform_1(%arg0: i32) -> (i32, i32) {
    %c0_i32 = arith.constant 0 : i32
    %c0_i32_0 = arith.constant 0 : i32
    return %arg0, %c0_i32 : i32, i32
  }
  func.func @transform_2(%arg0: i32) -> (i32, i32) {
    %c0_i32 = arith.constant 0 : i32
    %c0_i32_0 = arith.constant 0 : i32
    return %arg0, %c0_i32 : i32, i32
  }
  func.func @transform_3(%arg0: i32) -> (i32, i32) {
    %c0_i32 = arith.constant 0 : i32
    %c0_i32_0 = arith.constant 0 : i32
    %c0_i32_1 = arith.constant 0 : i32
    return %c0_i32, %c0_i32_0 : i32, i32
  }
  func.func @transform_4(%arg0: i32) -> (i32, i32) {
    %c0_i32 = arith.constant 0 : i32
    %c0_i32_0 = arith.constant 0 : i32
    %c0_i32_1 = arith.constant 0 : i32
    return %c0_i32, %c0_i32_0 : i32, i32
  }
  func.func @transform_5(%arg0: i32) -> (i32, i32) {
    %c0_i32 = arith.constant 0 : i32
    %c0_i32_0 = arith.constant 0 : i32
    %c0_i32_1 = arith.constant 0 : i32
    return %c0_i32, %c0_i32_0 : i32, i32
  }
  func.func @transform_6(%arg0: i32) -> (i32, i32) {
    %c0_i32 = arith.constant 0 : i32
    %c0_i32_0 = arith.constant 0 : i32
    %c0_i32_1 = arith.constant 0 : i32
    return %c0_i32, %c0_i32_0 : i32, i32
  }
  func.func @transform_7(%arg0: i32) -> (i32, i32) {
    %c0_i32 = arith.constant 0 : i32
    %c0_i32_0 = arith.constant 0 : i32
    return %c0_i32, %arg0 : i32, i32
  }
}

module attributes {stable_mosaic.version = 11 : i64} {
  func.func @_mmd_kernel(%arg0: i32, %arg1: memref<5xf32, #tpu.memory_space<smem>>, %arg2: memref<8x32xf32, #tpu.memory_space<vmem>>, %arg3: memref<8x1xf32, #tpu.memory_space<vmem>>, %arg4: memref<8x32xf32, #tpu.memory_space<vmem>>, %arg5: memref<8x32xf32, #tpu.memory_space<vmem>>, %arg6: memref<1x8xf32, #tpu.memory_space<vmem>>, %arg7: memref<1x8xf32, #tpu.memory_space<vmem>>, %arg8: memref<8x128xf32, #tpu.memory_space<vmem>>) attributes {dimension_semantics = [#tpu.dimension_semantics<parallel>], iteration_bounds = array<i64: 1>, scalar_prefetch = 0 : i64, scratch_operands = 0 : i64, tpu.core_type = #tpu.core_type<tc>, window_params = [{transform_indices = @transform_0, window_bounds = array<i64: 5>}, {transform_indices = @transform_1, window_bounds = array<i64: 8, 32>}, {transform_indices = @transform_2, window_bounds = array<i64: 8, 1>}, {pipeline_mode = #tpu.pipeline_mode<synchronous>, transform_indices = @transform_3, window_bounds = array<i64: 8, 32>}, {pipeline_mode = #tpu.pipeline_mode<synchronous>, transform_indices = @transform_4, window_bounds = array<i64: 8, 32>}, {pipeline_mode = #tpu.pipeline_mode<synchronous>, transform_indices = @transform_5, window_bounds = array<i64: 1, 8>}, {pipeline_mode = #tpu.pipeline_mode<synchronous>, transform_indices = @transform_6, window_bounds = array<i64: 1, 8>}, {transform_indices = @transform_7, window_bounds = array<i64: 8, 128>}]} {
    %c0 = arith.constant 0 : index
    %c0_0 = arith.constant 0 : index
    %0 = vector.load %arg2[%c0, %c0_0] : memref<8x32xf32, #tpu.memory_space<vmem>>, vector<8x32xf32>
    %c0_1 = arith.constant 0 : index
    %c0_2 = arith.constant 0 : index
    %1 = vector.load %arg3[%c0_1, %c0_2] : memref<8x1xf32, #tpu.memory_space<vmem>>, vector<8x1xf32>
    %c0_3 = arith.constant 0 : index
    %c0_4 = arith.constant 0 : index
    %2 = vector.load %arg4[%c0_3, %c0_4] : memref<8x32xf32, #tpu.memory_space<vmem>>, vector<8x32xf32>
    %cst = arith.constant dense<0.000000e+00> : vector<8x8xf32>
    %3 = tpu.matmul %0, %2, %cst {dimension_numbers = #tpu.dot_dimension_numbers<[1], [1], [0], [0], [0, 0, 1, 0], [], []>} : vector<8x32xf32>, vector<8x32xf32>, vector<8x8xf32> -> vector<8x8xf32>
    %c0_5 = arith.constant 0 : index
    %c0_6 = arith.constant 0 : index
    %4 = vector.load %arg5[%c0_5, %c0_6] : memref<8x32xf32, #tpu.memory_space<vmem>>, vector<8x32xf32>
    %cst_7 = arith.constant dense<0.000000e+00> : vector<8x8xf32>
    %5 = tpu.matmul %0, %4, %cst_7 {dimension_numbers = #tpu.dot_dimension_numbers<[1], [1], [0], [0], [0, 0, 1, 0], [], []>} : vector<8x32xf32>, vector<8x32xf32>, vector<8x8xf32> -> vector<8x8xf32>
    %c0_8 = arith.constant 0 : index
    %c0_9 = arith.constant 0 : index
    %6 = vector.load %arg6[%c0_8, %c0_9] : memref<1x8xf32, #tpu.memory_space<vmem>>, vector<1x8xf32>
    %7 = vector.broadcast %1 : vector<8x1xf32> to vector<8x8xf32>
    %8 = vector.broadcast %6 : vector<1x8xf32> to vector<8x8xf32>
    %9 = arith.addf %7, %8 : vector<8x8xf32>
    %cst_10 = arith.constant 2.000000e+00 : f32
    %10 = vector.broadcast %cst_10 : f32 to vector<8x8xf32>
    %11 = arith.mulf %10, %3 : vector<8x8xf32>
    %12 = arith.subf %9, %11 : vector<8x8xf32>
    %cst_11 = arith.constant 0.000000e+00 : f32
    %13 = vector.broadcast %cst_11 : f32 to vector<8x8xf32>
    %14 = arith.maximumf %12, %13 : vector<8x8xf32>
    %c0_12 = arith.constant 0 : index
    %c0_13 = arith.constant 0 : index
    %15 = vector.load %arg7[%c0_12, %c0_13] : memref<1x8xf32, #tpu.memory_space<vmem>>, vector<1x8xf32>
    %16 = vector.broadcast %1 : vector<8x1xf32> to vector<8x8xf32>
    %17 = vector.broadcast %15 : vector<1x8xf32> to vector<8x8xf32>
    %18 = arith.addf %16, %17 : vector<8x8xf32>
    %cst_14 = arith.constant 2.000000e+00 : f32
    %19 = vector.broadcast %cst_14 : f32 to vector<8x8xf32>
    %20 = arith.mulf %19, %5 : vector<8x8xf32>
    %21 = arith.subf %18, %20 : vector<8x8xf32>
    %cst_15 = arith.constant 0.000000e+00 : f32
    %22 = vector.broadcast %cst_15 : f32 to vector<8x8xf32>
    %23 = arith.maximumf %21, %22 : vector<8x8xf32>
    %cst_16 = arith.constant 0.000000e+00 : f32
    %24 = vector.broadcast %cst_16 : f32 to vector<8x8xf32>
    %c0_17 = arith.constant 0 : index
    %25 = memref.load %arg1[%c0_17] : memref<5xf32, #tpu.memory_space<smem>>
    %26 = vector.broadcast %25 : f32 to vector<8x8xf32>
    %27 = arith.mulf %14, %26 : vector<8x8xf32>
    %28 = vector.broadcast %25 : f32 to vector<8x8xf32>
    %29 = arith.mulf %23, %28 : vector<8x8xf32>
    %30 = math.exp %27 : vector<8x8xf32>
    %31 = math.exp %29 : vector<8x8xf32>
    %32 = arith.subf %30, %31 : vector<8x8xf32>
    %33 = arith.addf %24, %32 : vector<8x8xf32>
    %c1 = arith.constant 1 : index
    %34 = memref.load %arg1[%c1] : memref<5xf32, #tpu.memory_space<smem>>
    %35 = vector.broadcast %34 : f32 to vector<8x8xf32>
    %36 = arith.mulf %14, %35 : vector<8x8xf32>
    %37 = vector.broadcast %34 : f32 to vector<8x8xf32>
    %38 = arith.mulf %23, %37 : vector<8x8xf32>
    %39 = math.exp %36 : vector<8x8xf32>
    %40 = math.exp %38 : vector<8x8xf32>
    %41 = arith.subf %39, %40 : vector<8x8xf32>
    %42 = arith.addf %33, %41 : vector<8x8xf32>
    %c2 = arith.constant 2 : index
    %43 = memref.load %arg1[%c2] : memref<5xf32, #tpu.memory_space<smem>>
    %44 = vector.broadcast %43 : f32 to vector<8x8xf32>
    %45 = arith.mulf %14, %44 : vector<8x8xf32>
    %46 = vector.broadcast %43 : f32 to vector<8x8xf32>
    %47 = arith.mulf %23, %46 : vector<8x8xf32>
    %48 = math.exp %45 : vector<8x8xf32>
    %49 = math.exp %47 : vector<8x8xf32>
    %50 = arith.subf %48, %49 : vector<8x8xf32>
    %51 = arith.addf %42, %50 : vector<8x8xf32>
    %c3 = arith.constant 3 : index
    %52 = memref.load %arg1[%c3] : memref<5xf32, #tpu.memory_space<smem>>
    %53 = vector.broadcast %52 : f32 to vector<8x8xf32>
    %54 = arith.mulf %14, %53 : vector<8x8xf32>
    %55 = vector.broadcast %52 : f32 to vector<8x8xf32>
    %56 = arith.mulf %23, %55 : vector<8x8xf32>
    %57 = math.exp %54 : vector<8x8xf32>
    %58 = math.exp %56 : vector<8x8xf32>
    %59 = arith.subf %57, %58 : vector<8x8xf32>
    %60 = arith.addf %51, %59 : vector<8x8xf32>
    %c4 = arith.constant 4 : index
    %61 = memref.load %arg1[%c4] : memref<5xf32, #tpu.memory_space<smem>>
    %62 = vector.broadcast %61 : f32 to vector<8x8xf32>
    %63 = arith.mulf %14, %62 : vector<8x8xf32>
    %64 = vector.broadcast %61 : f32 to vector<8x8xf32>
    %65 = arith.mulf %23, %64 : vector<8x8xf32>
    %66 = math.exp %63 : vector<8x8xf32>
    %67 = math.exp %65 : vector<8x8xf32>
    %68 = arith.subf %66, %67 : vector<8x8xf32>
    %69 = arith.addf %60, %68 : vector<8x8xf32>
    %70 = vector.shape_cast %69 : vector<8x8xf32> to vector<1x8x8xf32>
    %cst_18 = arith.constant dense<0.000000e+00> : vector<1xf32>
    %71 = vector.multi_reduction <add>, %70, %cst_18 [1, 2] : vector<1x8x8xf32> to vector<1xf32>
    %72 = vector.shape_cast %71 : vector<1xf32> to vector<1x1x1xf32>
    %73 = vector.extract %72[0, 0, 0] : f32 from vector<1x1x1xf32>
    %74 = vector.broadcast %73 : f32 to vector<8x128xf32>
    %c0_19 = arith.constant 0 : index
    %c0_20 = arith.constant 0 : index
    %75 = vector.load %arg8[%c0_19, %c0_20] : memref<8x128xf32, #tpu.memory_space<vmem>>, vector<8x128xf32>
    tpu.vector_store %arg8[%c0_19, %c0_20], %74 {strides = array<i32>} : memref<8x128xf32, #tpu.memory_space<vmem>>, vector<8x128xf32>,
    return
  }
  func.func @transform_0(%arg0: i32) -> i32 {
    %c0_i32 = arith.constant 0 : i32
    %c0_i32_0 = arith.constant 0 : i32
    return %c0_i32 : i32
  }
  func.func @transform_1(%arg0: i32) -> (i32, i32) {
    %c0_i32 = arith.constant 0 : i32
    %c0_i32_0 = arith.constant 0 : i32
    return %arg0, %c0_i32 : i32, i32
  }
  func.func @transform_2(%arg0: i32) -> (i32, i32) {
    %c0_i32 = arith.constant 0 : i32
    %c0_i32_0 = arith.constant 0 : i32
    return %arg0, %c0_i32 : i32, i32
  }
  func.func @transform_3(%arg0: i32) -> (i32, i32) {
    %c0_i32 = arith.constant 0 : i32
    %c0_i32_0 = arith.constant 0 : i32
    %c0_i32_1 = arith.constant 0 : i32
    return %c0_i32, %c0_i32_0 : i32, i32
  }
  func.func @transform_4(%arg0: i32) -> (i32, i32) {
    %c0_i32 = arith.constant 0 : i32
    %c0_i32_0 = arith.constant 0 : i32
    %c0_i32_1 = arith.constant 0 : i32
    return %c0_i32, %c0_i32_0 : i32, i32
  }
  func.func @transform_5(%arg0: i32) -> (i32, i32) {
    %c0_i32 = arith.constant 0 : i32
    %c0_i32_0 = arith.constant 0 : i32
    %c0_i32_1 = arith.constant 0 : i32
    return %c0_i32, %c0_i32_0 : i32, i32
  }
  func.func @transform_6(%arg0: i32) -> (i32, i32) {
    %c0_i32 = arith.constant 0 : i32
    %c0_i32_0 = arith.constant 0 : i32
    %c0_i32_1 = arith.constant 0 : i32
    return %c0_i32, %c0_i32_0 : i32, i32
  }
  func.func @transform_7(%arg0: i32) -> (i32, i32) {
    %c0_i32 = arith.constant 0 : i32
    %c0_i32_0 = arith.constant 0 : i32
    return %c0_i32, %arg0 : i32, i32
  }
}

</mosaic_0001>

<llo_original>
// kernel: tpu_custom_call.1
$region0: #{tpu_custom_call.1}
  #allocation0 [shape = 'u32[]', space=smem, size = 0x4, offset = 0x4, fixed_abs, tag = 'smem constant byte address 0x4 - core index']
  #allocation1 [shape = 'u32[144,128]{1,0:T(1,128)}', space=vmem, size = 0x12000, scoped, tag = 'internal scratch']
  %s0 = inlined_call_operand.hbm [shape: f32[5], index: 0, kind: input, shape index: {}]
  %s1 = inlined_call_operand.vmem [shape: f32[8,32], index: 1, kind: input, shape index: {}]
  %s2 = inlined_call_operand.vmem [shape: f32[8,1], index: 2, kind: input, shape index: {}]
  %s3 = inlined_call_operand.vmem [shape: f32[8,32], index: 3, kind: input, shape index: {}]
  %s4 = inlined_call_operand.vmem [shape: f32[8,32], index: 4, kind: input, shape index: {}]
  %s5 = inlined_call_operand.vmem [shape: f32[1,8], index: 5, kind: input, shape index: {}]
  %s6 = inlined_call_operand.vmem [shape: f32[1,8], index: 6, kind: input, shape index: {}]
  %s7 = inlined_call_operand.hbm [shape: f32[8,128], index: 7, kind: output, shape index: {}]
  %s8 = sld [smem:[#allocation0]]
  $region42: #{tpu_custom_call.1} parent=0
    _
  %s10 = ssub.s32 1, %s8
  %s11 = scalar_select 0, %s10, %s8
  $region1: #{tpu_custom_call.1} parent=0
    #allocation2 [shape = 'u8[512]{0}', space=smem, size = 0x200, scoped, tag = 'input window, operand 0, single buffered']
    #allocation3 [shape = 's32[1]{0}', space=sflag, size = 0x4, scoped, tag = 'scoped memory for tpu_custom_call.1']
    #allocation4 [shape = 's32[1]{0}', space=sflag, size = 0x4, scoped, tag = 'scoped memory for tpu_custom_call.1']
    #allocation5 [shape = 'u8[4096]{0}', space=vmem, size = 0x1000, scoped, tag = 'output window, operand 0, single buffered']
    %12 = vsyncpa [#allocation4], 0
    %13 = vsyncpa [#allocation3], 0
    // Predicated region
    $region2: #{tpu_custom_call.1} parent=1 // pred_check
      _
    $region3: #{tpu_custom_call.1} parent=1 // pred_check_branch
      %15 = sbr.rel (0) target = $region5
    $region4: #{tpu_custom_call.1} parent=1 // pred_region
      %s17 = ssub.s32 16, 16
      %18 = vsyncadd [#allocation4], %s17
      %21 = dma.hbm_to_smem %s0, 16, [#allocation2], [#allocation4]
    $region5: #{tpu_custom_call.1} parent=1 // pred_fallthru
      _
    // Predicated region
    $region6: #{tpu_custom_call.1} parent=1 // pred_check
      _
    $region7: #{tpu_custom_call.1} parent=1 // pred_check_branch
      %23 = sbr.rel (0) target = $region9
    $region8: #{tpu_custom_call.1} parent=1 // pred_region
      _
    $region9: #{tpu_custom_call.1} parent=1 // pred_fallthru
      _
    // Predicated region
    $region10: #{tpu_custom_call.1} parent=1 // pred_check
      _
    $region11: #{tpu_custom_call.1} parent=1 // pred_check_branch
      %25 = sbr.rel (0) target = $region13
    $region12: #{tpu_custom_call.1} parent=1 // pred_region
      _
    $region13: #{tpu_custom_call.1} parent=1 // pred_fallthru
      _
    // Predicated region
    $region14: #{tpu_custom_call.1} parent=1 // pred_check
      _
    $region15: #{tpu_custom_call.1} parent=1 // pred_check_branch
      %27 = sbr.rel (0) target = $region17
    $region16: #{tpu_custom_call.1} parent=1 // pred_region
      _
    $region17: #{tpu_custom_call.1} parent=1 // pred_fallthru
      _
    // Predicated region
    $region18: #{tpu_custom_call.1} parent=1 // pred_check
      _
    $region19: #{tpu_custom_call.1} parent=1 // pred_check_branch
      %29 = sbr.rel (0) target = $region21
    $region20: #{tpu_custom_call.1} parent=1 // pred_region
      _
    $region21: #{tpu_custom_call.1} parent=1 // pred_fallthru
      _
    // Predicated region
    $region22: #{tpu_custom_call.1} parent=1 // pred_check
      _
    $region23: #{tpu_custom_call.1} parent=1 // pred_check_branch
      %31 = sbr.rel (0) target = $region25
    $region24: #{tpu_custom_call.1} parent=1 // pred_region
      _
    $region25: #{tpu_custom_call.1} parent=1 // pred_fallthru
      _
    // Predicated region
    $region26: #{tpu_custom_call.1} parent=1 // pred_check
      _
    $region27: #{tpu_custom_call.1} parent=1 // pred_check_branch
      %33 = sbr.rel (0) target = $region29
    $region28: #{tpu_custom_call.1} parent=1 // pred_region
      _
    $region29: #{tpu_custom_call.1} parent=1 // pred_fallthru
      _
    // Predicated region
    $region30: #{tpu_custom_call.1} parent=1 // pred_check
      _
    $region31: #{tpu_custom_call.1} parent=1 // pred_check_branch
      %35 = sbr.rel (0) target = $region33
    $region32: #{tpu_custom_call.1} parent=1 // pred_region
      %36 = dma.done [#allocation4], 16
    $region33: #{tpu_custom_call.1} parent=1 // pred_fallthru
      _
    %37 = sfence
    %v38 = vld [vmem:[%s1] sm:$0xff]
    %v39 = vld [vmem:[%s2] sm:$0xff]
    %v40 = vld [vmem:[%s3] sm:$0xff]
    %vm41 = vcmask 261120
    %v43 = vsel %vm41, %v38, 0
    %v46 = vsel %vm41, %v40, 0
    %48 = vmatprep.subr.mxu0 0.0
    %49 = vmatpush1.xpose.msra.mxu0 %v46
    %50 = vmatprep.subr.mxu0 0.0
    %51 = vmatpush1.xpose.msra.mxu0 0.0
    %52 = vmatprep.subr.mxu0 0.0
    %53 = vmatpush1.xpose.msra.mxu0 0.0
    %54 = vmatprep.subr.mxu0 0.0
    %55 = vmatpush1.xpose.msra.mxu0 0.0
    %56 = vmatprep.subr.mxu0 0.0
    %57 = vmatpush1.xpose.msra.mxu0 0.0
    %58 = vmatprep.subr.mxu0 0.0
    %59 = vmatpush1.xpose.msra.mxu0 0.0
    %60 = vmatprep.subr.mxu0 0.0
    %61 = vmatpush1.xpose.msra.mxu0 0.0
    %62 = vmatprep.subr.mxu0 0.0
    %63 = vmatpush1.xpose.msra.mxu0 0.0
    %64 = vmatprep.subr.mxu0 0.0
    %65 = vmatpush1.xpose.msra.mxu0 0.0
    %66 = vmatprep.subr.mxu0 0.0
    %67 = vmatpush1.xpose.msra.mxu0 0.0
    %68 = vmatprep.subr.mxu0 0.0
    %69 = vmatpush1.xpose.msra.mxu0 0.0
    %70 = vmatprep.subr.mxu0 0.0
    %71 = vmatpush1.xpose.msra.mxu0 0.0
    %72 = vmatprep.subr.mxu0 0.0
    %73 = vmatpush1.xpose.msra.mxu0 0.0
    %74 = vmatprep.subr.mxu0 0.0
    %75 = vmatpush1.xpose.msra.mxu0 0.0
    %76 = vmatprep.subr.mxu0 0.0
    %77 = vmatpush1.xpose.msra.mxu0 0.0
    %78 = vmatprep.subr.mxu0 0.0
    %79 = vmatpush1.xpose.msra.mxu0 0.0
    %80 = vmatprep.subr.mxu0 0.0
    %81 = vmatpush1.xpose.msra.mxu0 0.0
    %82 = vmatprep.subr.mxu0 0.0
    %83 = vmatpush1.xpose.msra.mxu0 0.0
    %84 = vmatprep.subr.mxu0 0.0
    %85 = vmatpush1.xpose.msra.mxu0 0.0
    %86 = vmatprep.subr.mxu0 0.0
    %87 = vmatpush1.xpose.msra.mxu0 0.0
    %88 = vmatprep.subr.mxu0 0.0
    %89 = vmatpush1.xpose.msra.mxu0 0.0
    %90 = vmatprep.subr.mxu0 0.0
    %91 = vmatpush1.xpose.msra.mxu0 0.0
    %92 = vmatprep.subr.mxu0 0.0
    %93 = vmatpush1.xpose.msra.mxu0 0.0
    %94 = vmatprep.subr.mxu0 0.0
    %95 = vmatpush1.xpose.msra.mxu0 0.0
    %96 = vmatprep.subr.mxu0 0.0
    %97 = vmatpush1.xpose.msra.mxu0 0.0
    %98 = vmatprep.subr.mxu0 0.0
    %99 = vmatpush1.xpose.msra.mxu0 0.0
    %100 = vmatprep.subr.mxu0 0.0
    %101 = vmatpush1.xpose.msra.mxu0 0.0
    %102 = vmatprep.subr.mxu0 0.0
    %103 = vmatpush1.xpose.msra.mxu0 0.0
    %104 = vmatprep.subr.mxu0 0.0
    %105 = vmatpush1.xpose.msra.mxu0 0.0
    %106 = vmatprep.subr.mxu0 0.0
    %107 = vmatpush1.xpose.msra.mxu0 0.0
    %108 = vmatprep.subr.mxu0 0.0
    %109 = vmatpush1.xpose.msra.mxu0 0.0
    %110 = vmatprep.subr.mxu0 0.0
    %111 = vmatpush1.xpose.msra.mxu0 0.0
    %112 = vmatprep.mubr.f32.mxu0 0.0
    %113 = vmatmul.mubr.f32.gmra.mrb[0].mxu0 %v43
    %v114 = vpop.f32.mrb[0].mxu0
    %v115 = vadd.f32 0.0, %v114
    %v116 = vpop.f32.mrb[0].mxu0
    %117 = vdwg.mxu0
    %v118 = vld [vmem:[%s4] sm:$0xff]
    %v120 = vsel %vm41, %v118, 0
    %122 = vmatprep.subr.mxu0 0.0
    %123 = vmatpush1.xpose.msra.mxu0 %v120
    %124 = vmatprep.subr.mxu0 0.0
    %125 = vmatpush1.xpose.msra.mxu0 0.0
    %126 = vmatprep.subr.mxu0 0.0
    %127 = vmatpush1.xpose.msra.mxu0 0.0
    %128 = vmatprep.subr.mxu0 0.0
    %129 = vmatpush1.xpose.msra.mxu0 0.0
    %130 = vmatprep.subr.mxu0 0.0
    %131 = vmatpush1.xpose.msra.mxu0 0.0
    %132 = vmatprep.subr.mxu0 0.0
    %133 = vmatpush1.xpose.msra.mxu0 0.0
    %134 = vmatprep.subr.mxu0 0.0
    %135 = vmatpush1.xpose.msra.mxu0 0.0
    %136 = vmatprep.subr.mxu0 0.0
    %137 = vmatpush1.xpose.msra.mxu0 0.0
    %138 = vmatprep.subr.mxu0 0.0
    %139 = vmatpush1.xpose.msra.mxu0 0.0
    %140 = vmatprep.subr.mxu0 0.0
    %141 = vmatpush1.xpose.msra.mxu0 0.0
    %142 = vmatprep.subr.mxu0 0.0
    %143 = vmatpush1.xpose.msra.mxu0 0.0
    %144 = vmatprep.subr.mxu0 0.0
    %145 = vmatpush1.xpose.msra.mxu0 0.0
    %146 = vmatprep.subr.mxu0 0.0
    %147 = vmatpush1.xpose.msra.mxu0 0.0
    %148 = vmatprep.subr.mxu0 0.0
    %149 = vmatpush1.xpose.msra.mxu0 0.0
    %150 = vmatprep.subr.mxu0 0.0
    %151 = vmatpush1.xpose.msra.mxu0 0.0
    %152 = vmatprep.subr.mxu0 0.0
    %153 = vmatpush1.xpose.msra.mxu0 0.0
    %154 = vmatprep.subr.mxu0 0.0
    %155 = vmatpush1.xpose.msra.mxu0 0.0
    %156 = vmatprep.subr.mxu0 0.0
    %157 = vmatpush1.xpose.msra.mxu0 0.0
    %158 = vmatprep.subr.mxu0 0.0
    %159 = vmatpush1.xpose.msra.mxu0 0.0
    %160 = vmatprep.subr.mxu0 0.0
    %161 = vmatpush1.xpose.msra.mxu0 0.0
    %162 = vmatprep.subr.mxu0 0.0
    %163 = vmatpush1.xpose.msra.mxu0 0.0
    %164 = vmatprep.subr.mxu0 0.0
    %165 = vmatpush1.xpose.msra.mxu0 0.0
    %166 = vmatprep.subr.mxu0 0.0
    %167 = vmatpush1.xpose.msra.mxu0 0.0
    %168 = vmatprep.subr.mxu0 0.0
    %169 = vmatpush1.xpose.msra.mxu0 0.0
    %170 = vmatprep.subr.mxu0 0.0
    %171 = vmatpush1.xpose.msra.mxu0 0.0
    %172 = vmatprep.subr.mxu0 0.0
    %173 = vmatpush1.xpose.msra.mxu0 0.0
    %174 = vmatprep.subr.mxu0 0.0
    %175 = vmatpush1.xpose.msra.mxu0 0.0
    %176 = vmatprep.subr.mxu0 0.0
    %177 = vmatpush1.xpose.msra.mxu0 0.0
    %178 = vmatprep.subr.mxu0 0.0
    %179 = vmatpush1.xpose.msra.mxu0 0.0
    %180 = vmatprep.subr.mxu0 0.0
    %181 = vmatpush1.xpose.msra.mxu0 0.0
    %182 = vmatprep.subr.mxu0 0.0
    %183 = vmatpush1.xpose.msra.mxu0 0.0
    %184 = vmatprep.subr.mxu0 0.0
    %185 = vmatpush1.xpose.msra.mxu0 0.0
    %186 = vmatprep.mubr.f32.mxu0 0.0
    %187 = vmatmul.mubr.f32.gmra.mrb[0].mxu0 %v43
    %v188 = vpop.f32.mrb[0].mxu0
    %v189 = vadd.f32 0.0, %v188
    %v190 = vpop.f32.mrb[0].mxu0
    %191 = vdwg.mxu0
    %v192 = vld [vmem:[%s5] sm:$0x1]
    %194 = vset.pattern.permute.xlu0 0
    %195 = vperm.xlu0 %194, %v39
    %v196 = vpop.permute.xlu0 %195
    %v199 = vlaneseq
    %v200 = vshrl.u32 %v199, 7
    %v201 = vsub.s32 0, %v200
    %v202 = vrot.slane %v192, %v201
    %v204 = vadd.f32 %v196, %v202
    %v205 = vmul.f32 %v115, 2.0
    %v206 = vsub.f32 %v204, %v205
    %v207 = vmax.f32 %v206, 0.0
    %v208 = vld [vmem:[%s6] sm:$0x1]
    %v210 = vlaneseq
    %v211 = vshrl.u32 %v210, 7
    %v212 = vsub.s32 0, %v211
    %v213 = vrot.slane %v208, %v212
    %v215 = vadd.f32 %v196, %v213
    %v216 = vmul.f32 %v189, 2.0
    %v217 = vsub.f32 %v215, %v216
    %v218 = vmax.f32 %v217, 0.0
    %s219 = sld [smem:[#allocation2]]
    %v220 = vstv %s219
    %v221 = vmul.f32 %v207, %v220
    %v222 = vmul.f32 %v218, %v220
    %v223 = vmul.f32 %v221, 1.442695
    %v224 = vpow.pop %v223
    %v225 = vmul.f32 %v222, 1.442695
    %v226 = vpow.pop %v225
    %v227 = vsub.f32 %v224, %v226
    %v228 = vadd.f32 %v227, 0.0
    %s229 = sld [smem:[#allocation2 + $0x1]]
    %v230 = vstv %s229
    %v231 = vmul.f32 %v207, %v230
    %v232 = vmul.f32 %v218, %v230
    %v233 = vmul.f32 %v231, 1.442695
    %v234 = vpow.pop %v233
    %v235 = vmul.f32 %v232, 1.442695
    %v236 = vpow.pop %v235
    %v237 = vsub.f32 %v234, %v236
    %v238 = vadd.f32 %v228, %v237
    %s239 = sld [smem:[#allocation2 + $0x2]]
    %v240 = vstv %s239
    %v241 = vmul.f32 %v207, %v240
    %v242 = vmul.f32 %v218, %v240
    %v243 = vmul.f32 %v241, 1.442695
    %v244 = vpow.pop %v243
    %v245 = vmul.f32 %v242, 1.442695
    %v246 = vpow.pop %v245
    %v247 = vsub.f32 %v244, %v246
    %v248 = vadd.f32 %v238, %v247
    %s249 = sld [smem:[#allocation2 + $0x3]]
    %v250 = vstv %s249
    %v251 = vmul.f32 %v207, %v250
    %v252 = vmul.f32 %v218, %v250
    %v253 = vmul.f32 %v251, 1.442695
    %v254 = vpow.pop %v253
    %v255 = vmul.f32 %v252, 1.442695
    %v256 = vpow.pop %v255
    %v257 = vsub.f32 %v254, %v256
    %v258 = vadd.f32 %v248, %v257
    %s259 = sld [smem:[#allocation2 + $0x4]]
    %v260 = vstv %s259
    %v261 = vmul.f32 %v207, %v260
    %v262 = vmul.f32 %v218, %v260
    %v263 = vmul.f32 %v261, 1.442695
    %v264 = vpow.pop %v263
    %v265 = vmul.f32 %v262, 1.442695
    %v266 = vpow.pop %v265
    %v267 = vsub.f32 %v264, %v266
    %v268 = vadd.f32 %v258, %v267
    %vm269 = vcmask 64512
    %v270 = vsel %vm269, %v268, 0.0
    %271 = vadd.xlane.f32.xlu0 %v270
    %v272 = vpop.xlane.xlu0 %271
    %v273 = vrot.slane %v272, 4
    %v274 = vadd.f32 %v272, %v273
    %v275 = vrot.slane %v274, 2
    %v276 = vadd.f32 %v274, %v275
    %v277 = vrot.slane %v276, 1
    %v278 = vadd.f32 %v276, %v277
    %s279 = vtos %v278
    %v280 = vstv %s279
    %281 = vst [vmem:[#allocation5] sm:$0xff] %v280
    // Predicated region
    $region34: #{tpu_custom_call.1} parent=1 // pred_check
      _
    $region35: #{tpu_custom_call.1} parent=1 // pred_check_branch
      %283 = sbr.rel (0) target = $region37
    $region36: #{tpu_custom_call.1} parent=1 // pred_region
      %s285 = ssub.s32 128, 128
      %286 = vsyncadd [#allocation3], %s285
      %s288 = sshll.u32 [#allocation5], 4
      %s289 = int_to_ptr.vmem [resolvable:$true] %s288
      %291 = dma.vmem_to_hbm [thread:$0]  %s289, 128, %s7, [#allocation3]
    $region37: #{tpu_custom_call.1} parent=1 // pred_fallthru
      _
    // Predicated region
    $region38: #{tpu_custom_call.1} parent=1 // pred_check
      _
    $region39: #{tpu_custom_call.1} parent=1 // pred_check_branch
      %293 = sbr.rel (0) target = $region41
    $region40: #{tpu_custom_call.1} parent=1 // pred_region
      %294 = dma.done [#allocation3], 128
    $region41: #{tpu_custom_call.1} parent=1 // pred_fallthru
      _
    %295 = vsyncpa [#allocation3], 1
    %296 = vsyncpa [#allocation4], 1

// kernel: tpu_custom_call.1
$region0: #{tpu_custom_call.1}
  #allocation0 [shape = 'u32[]', space=smem, size = 0x4, offset = 0x4, fixed_abs, tag = 'smem constant byte address 0x4 - core index']
  #allocation1 [shape = 'u32[144,128]{1,0:T(1,128)}', space=vmem, size = 0x12000, scoped, tag = 'internal scratch']
  %s0 = inlined_call_operand.hbm [shape: f32[5], index: 0, kind: input, shape index: {}]
  %s1 = inlined_call_operand.vmem [shape: f32[8,32], index: 1, kind: input, shape index: {}]
  %s2 = inlined_call_operand.vmem [shape: f32[8,1], index: 2, kind: input, shape index: {}]
  %s3 = inlined_call_operand.vmem [shape: f32[8,32], index: 3, kind: input, shape index: {}]
  %s4 = inlined_call_operand.vmem [shape: f32[8,32], index: 4, kind: input, shape index: {}]
  %s5 = inlined_call_operand.vmem [shape: f32[1,8], index: 5, kind: input, shape index: {}]
  %s6 = inlined_call_operand.vmem [shape: f32[1,8], index: 6, kind: input, shape index: {}]
  %s7 = inlined_call_operand.hbm [shape: f32[8,128], index: 7, kind: output, shape index: {}]
  %s8 = sld [smem:[#allocation0]]
  $region42: #{tpu_custom_call.1} parent=0
    _
  %s10 = ssub.s32 1, %s8
  %s11 = scalar_select 0, %s10, %s8
  $region1: #{tpu_custom_call.1} parent=0
    #allocation2 [shape = 'u8[512]{0}', space=smem, size = 0x200, scoped, tag = 'input window, operand 0, single buffered']
    #allocation3 [shape = 's32[1]{0}', space=sflag, size = 0x4, scoped, tag = 'scoped memory for tpu_custom_call.1']
    #allocation4 [shape = 's32[1]{0}', space=sflag, size = 0x4, scoped, tag = 'scoped memory for tpu_custom_call.1']
    #allocation5 [shape = 'u8[4096]{0}', space=vmem, size = 0x1000, scoped, tag = 'output window, operand 0, single buffered']
    %12 = vsyncpa [#allocation4], 0
    %13 = vsyncpa [#allocation3], 0
    // Predicated region
    $region2: #{tpu_custom_call.1} parent=1 // pred_check
      _
    $region3: #{tpu_custom_call.1} parent=1 // pred_check_branch
      %15 = sbr.rel (0) target = $region5
    $region4: #{tpu_custom_call.1} parent=1 // pred_region
      %s17 = ssub.s32 16, 16
      %18 = vsyncadd [#allocation4], %s17
      %21 = dma.hbm_to_smem %s0, 16, [#allocation2], [#allocation4]
    $region5: #{tpu_custom_call.1} parent=1 // pred_fallthru
      _
    // Predicated region
    $region6: #{tpu_custom_call.1} parent=1 // pred_check
      _
    $region7: #{tpu_custom_call.1} parent=1 // pred_check_branch
      %23 = sbr.rel (0) target = $region9
    $region8: #{tpu_custom_call.1} parent=1 // pred_region
      _
    $region9: #{tpu_custom_call.1} parent=1 // pred_fallthru
      _
    // Predicated region
    $region10: #{tpu_custom_call.1} parent=1 // pred_check
      _
    $region11: #{tpu_custom_call.1} parent=1 // pred_check_branch
      %25 = sbr.rel (0) target = $region13
    $region12: #{tpu_custom_call.1} parent=1 // pred_region
      _
    $region13: #{tpu_custom_call.1} parent=1 // pred_fallthru
      _
    // Predicated region
    $region14: #{tpu_custom_call.1} parent=1 // pred_check
      _
    $region15: #{tpu_custom_call.1} parent=1 // pred_check_branch
      %27 = sbr.rel (0) target = $region17
    $region16: #{tpu_custom_call.1} parent=1 // pred_region
      _
    $region17: #{tpu_custom_call.1} parent=1 // pred_fallthru
      _
    // Predicated region
    $region18: #{tpu_custom_call.1} parent=1 // pred_check
      _
    $region19: #{tpu_custom_call.1} parent=1 // pred_check_branch
      %29 = sbr.rel (0) target = $region21
    $region20: #{tpu_custom_call.1} parent=1 // pred_region
      _
    $region21: #{tpu_custom_call.1} parent=1 // pred_fallthru
      _
    // Predicated region
    $region22: #{tpu_custom_call.1} parent=1 // pred_check
      _
    $region23: #{tpu_custom_call.1} parent=1 // pred_check_branch
      %31 = sbr.rel (0) target = $region25
    $region24: #{tpu_custom_call.1} parent=1 // pred_region
      _
    $region25: #{tpu_custom_call.1} parent=1 // pred_fallthru
      _
    // Predicated region
    $region26: #{tpu_custom_call.1} parent=1 // pred_check
      _
    $region27: #{tpu_custom_call.1} parent=1 // pred_check_branch
      %33 = sbr.rel (0) target = $region29
    $region28: #{tpu_custom_call.1} parent=1 // pred_region
      _
    $region29: #{tpu_custom_call.1} parent=1 // pred_fallthru
      _
    // Predicated region
    $region30: #{tpu_custom_call.1} parent=1 // pred_check
      _
    $region31: #{tpu_custom_call.1} parent=1 // pred_check_branch
      %35 = sbr.rel (0) target = $region33
    $region32: #{tpu_custom_call.1} parent=1 // pred_region
      %36 = dma.done [#allocation4], 16
    $region33: #{tpu_custom_call.1} parent=1 // pred_fallthru
      _
    %37 = sfence
    %v38 = vld [vmem:[%s1] sm:$0xff]
    %v39 = vld [vmem:[%s2] sm:$0xff]
    %v40 = vld [vmem:[%s3] sm:$0xff]
    %vm41 = vcmask 261120
    %v43 = vsel %vm41, %v38, 0
    %v46 = vsel %vm41, %v40, 0
    %48 = vmatprep.subr.mxu0 0.0
    %49 = vmatpush1.xpose.msra.mxu0 %v46
    %50 = vmatprep.subr.mxu0 0.0
    %51 = vmatpush1.xpose.msra.mxu0 0.0
    %52 = vmatprep.subr.mxu0 0.0
    %53 = vmatpush1.xpose.msra.mxu0 0.0
    %54 = vmatprep.subr.mxu0 0.0
    %55 = vmatpush1.xpose.msra.mxu0 0.0
    %56 = vmatprep.subr.mxu0 0.0
    %57 = vmatpush1.xpose.msra.mxu0 0.0
    %58 = vmatprep.subr.mxu0 0.0
    %59 = vmatpush1.xpose.msra.mxu0 0.0
    %60 = vmatprep.subr.mxu0 0.0
    %61 = vmatpush1.xpose.msra.mxu0 0.0
    %62 = vmatprep.subr.mxu0 0.0
    %63 = vmatpush1.xpose.msra.mxu0 0.0
    %64 = vmatprep.subr.mxu0 0.0
    %65 = vmatpush1.xpose.msra.mxu0 0.0
    %66 = vmatprep.subr.mxu0 0.0
    %67 = vmatpush1.xpose.msra.mxu0 0.0
    %68 = vmatprep.subr.mxu0 0.0
    %69 = vmatpush1.xpose.msra.mxu0 0.0
    %70 = vmatprep.subr.mxu0 0.0
    %71 = vmatpush1.xpose.msra.mxu0 0.0
    %72 = vmatprep.subr.mxu0 0.0
    %73 = vmatpush1.xpose.msra.mxu0 0.0
    %74 = vmatprep.subr.mxu0 0.0
    %75 = vmatpush1.xpose.msra.mxu0 0.0
    %76 = vmatprep.subr.mxu0 0.0
    %77 = vmatpush1.xpose.msra.mxu0 0.0
    %78 = vmatprep.subr.mxu0 0.0
    %79 = vmatpush1.xpose.msra.mxu0 0.0
    %80 = vmatprep.subr.mxu0 0.0
    %81 = vmatpush1.xpose.msra.mxu0 0.0
    %82 = vmatprep.subr.mxu0 0.0
    %83 = vmatpush1.xpose.msra.mxu0 0.0
    %84 = vmatprep.subr.mxu0 0.0
    %85 = vmatpush1.xpose.msra.mxu0 0.0
    %86 = vmatprep.subr.mxu0 0.0
    %87 = vmatpush1.xpose.msra.mxu0 0.0
    %88 = vmatprep.subr.mxu0 0.0
    %89 = vmatpush1.xpose.msra.mxu0 0.0
    %90 = vmatprep.subr.mxu0 0.0
    %91 = vmatpush1.xpose.msra.mxu0 0.0
    %92 = vmatprep.subr.mxu0 0.0
    %93 = vmatpush1.xpose.msra.mxu0 0.0
    %94 = vmatprep.subr.mxu0 0.0
    %95 = vmatpush1.xpose.msra.mxu0 0.0
    %96 = vmatprep.subr.mxu0 0.0
    %97 = vmatpush1.xpose.msra.mxu0 0.0
    %98 = vmatprep.subr.mxu0 0.0
    %99 = vmatpush1.xpose.msra.mxu0 0.0
    %100 = vmatprep.subr.mxu0 0.0
    %101 = vmatpush1.xpose.msra.mxu0 0.0
    %102 = vmatprep.subr.mxu0 0.0
    %103 = vmatpush1.xpose.msra.mxu0 0.0
    %104 = vmatprep.subr.mxu0 0.0
    %105 = vmatpush1.xpose.msra.mxu0 0.0
    %106 = vmatprep.subr.mxu0 0.0
    %107 = vmatpush1.xpose.msra.mxu0 0.0
    %108 = vmatprep.subr.mxu0 0.0
    %109 = vmatpush1.xpose.msra.mxu0 0.0
    %110 = vmatprep.subr.mxu0 0.0
    %111 = vmatpush1.xpose.msra.mxu0 0.0
    %112 = vmatprep.mubr.f32.mxu0 0.0
    %113 = vmatmul.mubr.f32.gmra.mrb[0].mxu0 %v43
    %v114 = vpop.f32.mrb[0].mxu0
    %v115 = vadd.f32 0.0, %v114
    %v116 = vpop.f32.mrb[0].mxu0
    %117 = vdwg.mxu0
    %v118 = vld [vmem:[%s4] sm:$0xff]
    %v120 = vsel %vm41, %v118, 0
    %122 = vmatprep.subr.mxu0 0.0
    %123 = vmatpush1.xpose.msra.mxu0 %v120
    %124 = vmatprep.subr.mxu0 0.0
    %125 = vmatpush1.xpose.msra.mxu0 0.0
    %126 = vmatprep.subr.mxu0 0.0
    %127 = vmatpush1.xpose.msra.mxu0 0.0
    %128 = vmatprep.subr.mxu0 0.0
    %129 = vmatpush1.xpose.msra.mxu0 0.0
    %130 = vmatprep.subr.mxu0 0.0
    %131 = vmatpush1.xpose.msra.mxu0 0.0
    %132 = vmatprep.subr.mxu0 0.0
    %133 = vmatpush1.xpose.msra.mxu0 0.0
    %134 = vmatprep.subr.mxu0 0.0
    %135 = vmatpush1.xpose.msra.mxu0 0.0
    %136 = vmatprep.subr.mxu0 0.0
    %137 = vmatpush1.xpose.msra.mxu0 0.0
    %138 = vmatprep.subr.mxu0 0.0
    %139 = vmatpush1.xpose.msra.mxu0 0.0
    %140 = vmatprep.subr.mxu0 0.0
    %141 = vmatpush1.xpose.msra.mxu0 0.0
    %142 = vmatprep.subr.mxu0 0.0
    %143 = vmatpush1.xpose.msra.mxu0 0.0
    %144 = vmatprep.subr.mxu0 0.0
    %145 = vmatpush1.xpose.msra.mxu0 0.0
    %146 = vmatprep.subr.mxu0 0.0
    %147 = vmatpush1.xpose.msra.mxu0 0.0
    %148 = vmatprep.subr.mxu0 0.0
    %149 = vmatpush1.xpose.msra.mxu0 0.0
    %150 = vmatprep.subr.mxu0 0.0
    %151 = vmatpush1.xpose.msra.mxu0 0.0
    %152 = vmatprep.subr.mxu0 0.0
    %153 = vmatpush1.xpose.msra.mxu0 0.0
    %154 = vmatprep.subr.mxu0 0.0
    %155 = vmatpush1.xpose.msra.mxu0 0.0
    %156 = vmatprep.subr.mxu0 0.0
    %157 = vmatpush1.xpose.msra.mxu0 0.0
    %158 = vmatprep.subr.mxu0 0.0
    %159 = vmatpush1.xpose.msra.mxu0 0.0
    %160 = vmatprep.subr.mxu0 0.0
    %161 = vmatpush1.xpose.msra.mxu0 0.0
    %162 = vmatprep.subr.mxu0 0.0
    %163 = vmatpush1.xpose.msra.mxu0 0.0
    %164 = vmatprep.subr.mxu0 0.0
    %165 = vmatpush1.xpose.msra.mxu0 0.0
    %166 = vmatprep.subr.mxu0 0.0
    %167 = vmatpush1.xpose.msra.mxu0 0.0
    %168 = vmatprep.subr.mxu0 0.0
    %169 = vmatpush1.xpose.msra.mxu0 0.0
    %170 = vmatprep.subr.mxu0 0.0
    %171 = vmatpush1.xpose.msra.mxu0 0.0
    %172 = vmatprep.subr.mxu0 0.0
    %173 = vmatpush1.xpose.msra.mxu0 0.0
    %174 = vmatprep.subr.mxu0 0.0
    %175 = vmatpush1.xpose.msra.mxu0 0.0
    %176 = vmatprep.subr.mxu0 0.0
    %177 = vmatpush1.xpose.msra.mxu0 0.0
    %178 = vmatprep.subr.mxu0 0.0
    %179 = vmatpush1.xpose.msra.mxu0 0.0
    %180 = vmatprep.subr.mxu0 0.0
    %181 = vmatpush1.xpose.msra.mxu0 0.0
    %182 = vmatprep.subr.mxu0 0.0
    %183 = vmatpush1.xpose.msra.mxu0 0.0
    %184 = vmatprep.subr.mxu0 0.0
    %185 = vmatpush1.xpose.msra.mxu0 0.0
    %186 = vmatprep.mubr.f32.mxu0 0.0
    %187 = vmatmul.mubr.f32.gmra.mrb[0].mxu0 %v43
    %v188 = vpop.f32.mrb[0].mxu0
    %v189 = vadd.f32 0.0, %v188
    %v190 = vpop.f32.mrb[0].mxu0
    %191 = vdwg.mxu0
    %v192 = vld [vmem:[%s5] sm:$0x1]
    %194 = vset.pattern.permute.xlu0 0
    %195 = vperm.xlu0 %194, %v39
    %v196 = vpop.permute.xlu0 %195
    %v199 = vlaneseq
    %v200 = vshrl.u32 %v199, 7
    %v201 = vsub.s32 0, %v200
    %v202 = vrot.slane %v192, %v201
    %v204 = vadd.f32 %v196, %v202
    %v205 = vmul.f32 %v115, 2.0
    %v206 = vsub.f32 %v204, %v205
    %v207 = vmax.f32 %v206, 0.0
    %v208 = vld [vmem:[%s6] sm:$0x1]
    %v210 = vlaneseq
    %v211 = vshrl.u32 %v210, 7
    %v212 = vsub.s32 0, %v211
    %v213 = vrot.slane %v208, %v212
    %v215 = vadd.f32 %v196, %v213
    %v216 = vmul.f32 %v189, 2.0
    %v217 = vsub.f32 %v215, %v216
    %v218 = vmax.f32 %v217, 0.0
    %s219 = sld [smem:[#allocation2]]
    %v220 = vstv %s219
    %v221 = vmul.f32 %v207, %v220
    %v222 = vmul.f32 %v218, %v220
    %v223 = vmul.f32 %v221, 1.442695
    %v224 = vpow.pop %v223
    %v225 = vmul.f32 %v222, 1.442695
    %v226 = vpow.pop %v225
    %v227 = vsub.f32 %v224, %v226
    %v228 = vadd.f32 %v227, 0.0
    %s229 = sld [smem:[#allocation2 + $0x1]]
    %v230 = vstv %s229
    %v231 = vmul.f32 %v207, %v230
    %v232 = vmul.f32 %v218, %v230
    %v233 = vmul.f32 %v231, 1.442695
    %v234 = vpow.pop %v233
    %v235 = vmul.f32 %v232, 1.442695
    %v236 = vpow.pop %v235
    %v237 = vsub.f32 %v234, %v236
    %v238 = vadd.f32 %v228, %v237
    %s239 = sld [smem:[#allocation2 + $0x2]]
    %v240 = vstv %s239
    %v241 = vmul.f32 %v207, %v240
    %v242 = vmul.f32 %v218, %v240
    %v243 = vmul.f32 %v241, 1.442695
    %v244 = vpow.pop %v243
    %v245 = vmul.f32 %v242, 1.442695
    %v246 = vpow.pop %v245
    %v247 = vsub.f32 %v244, %v246
    %v248 = vadd.f32 %v238, %v247
    %s249 = sld [smem:[#allocation2 + $0x3]]
    %v250 = vstv %s249
    %v251 = vmul.f32 %v207, %v250
    %v252 = vmul.f32 %v218, %v250
    %v253 = vmul.f32 %v251, 1.442695
    %v254 = vpow.pop %v253
    %v255 = vmul.f32 %v252, 1.442695
    %v256 = vpow.pop %v255
    %v257 = vsub.f32 %v254, %v256
    %v258 = vadd.f32 %v248, %v257
    %s259 = sld [smem:[#allocation2 + $0x4]]
    %v260 = vstv %s259
    %v261 = vmul.f32 %v207, %v260
    %v262 = vmul.f32 %v218, %v260
    %v263 = vmul.f32 %v261, 1.442695
    %v264 = vpow.pop %v263
    %v265 = vmul.f32 %v262, 1.442695
    %v266 = vpow.pop %v265
    %v267 = vsub.f32 %v264, %v266
    %v268 = vadd.f32 %v258, %v267
    %vm269 = vcmask 64512
    %v270 = vsel %vm269, %v268, 0.0
    %271 = vadd.xlane.f32.xlu0 %v270
    %v272 = vpop.xlane.xlu0 %271
    %v273 = vrot.slane %v272, 4
    %v274 = vadd.f32 %v272, %v273
    %v275 = vrot.slane %v274, 2
    %v276 = vadd.f32 %v274, %v275
    %v277 = vrot.slane %v276, 1
    %v278 = vadd.f32 %v276, %v277
    %s279 = vtos %v278
    %v280 = vstv %s279
    %281 = vst [vmem:[#allocation5] sm:$0xff] %v280
    // Predicated region
    $region34: #{tpu_custom_call.1} parent=1 // pred_check
      _
    $region35: #{tpu_custom_call.1} parent=1 // pred_check_branch
      %283 = sbr.rel (0) target = $region37
    $region36: #{tpu_custom_call.1} parent=1 // pred_region
      %s285 = ssub.s32 128, 128
      %286 = vsyncadd [#allocation3], %s285
      %s288 = sshll.u32 [#allocation5], 4
      %s289 = int_to_ptr.vmem [resolvable:$true] %s288
      %291 = dma.vmem_to_hbm [thread:$0]  %s289, 128, %s7, [#allocation3]
    $region37: #{tpu_custom_call.1} parent=1 // pred_fallthru
      _
    // Predicated region
    $region38: #{tpu_custom_call.1} parent=1 // pred_check
      _
    $region39: #{tpu_custom_call.1} parent=1 // pred_check_branch
      %293 = sbr.rel (0) target = $region41
    $region40: #{tpu_custom_call.1} parent=1 // pred_region
      %294 = dma.done [#allocation3], 128
    $region41: #{tpu_custom_call.1} parent=1 // pred_fallthru
      _
    %295 = vsyncpa [#allocation3], 1
    %296 = vsyncpa [#allocation4], 1

</llo_original>
